<compile_context>
chip_gen: v5e
topology: v5e:2x2
jax: 0.10.0
libtpu: 0.0.40
codegen_flags: <defaults>
</compile_context>

<pallas_src>
import functools

import jax
import jax.numpy as jnp
import numpy as np
from jax import lax
from jax.experimental import pallas as pl
from jax.experimental.pallas import tpu as pltpu

EPS = 1e-5  # nn.LayerNorm default eps


def _weather_embed_kernel(x_ref, g_ref, b_ref, w_ref, bias_ref, o_ref, y_ref,
                          *, C, L, patch_len, P, D):
    """One batch tile.

    x_ref   : (TB, N)   raw input, N = C*L, flattened (c, l) native layout
    g_ref   : (1, N)    LayerNorm gamma, flattened (c, l)
    b_ref   : (1, N)    LayerNorm beta
    w_ref   : (K, D)    Linear weight, K = C*patch_len, rows ordered (c, lw)
    bias_ref: (1, D)    Linear bias
    o_ref   : (TB, P*D) output slab, columns ordered (p, d) -> lane-dense store
    y_ref   : (TB, N)   VMEM scratch for the normalized activations
    """
    n = C * L
    x = x_ref[...]

    # --- LayerNorm over all C*L elements per sample.  Two-pass statistics
    #     (mean-subtract then square) to avoid catastrophic cancellation for
    #     inputs with large means (temperatures in K, pressures in Pa, ...).
    mean = jnp.sum(x, axis=1, keepdims=True) * (1.0 / n)
    xc = x - mean
    var = jnp.sum(xc * xc, axis=1, keepdims=True) * (1.0 / n)
    inv = lax.rsqrt(var + EPS)
    y_ref[...] = xc * inv * g_ref[...] + b_ref[...]

    bias = bias_ref[...]                                    # (1, D)

    # --- Patch + Linear.  For patch p the LHS columns live at
    #     y[:, c*L + p*patch_len + lw].  Instead of relayouting the whole
    #     tensor we accumulate one small MXU matmul per channel from static
    #     Ref slices (no in-kernel transpose / lane-crossing reshape at all).
    #     A short final patch (seq_len % patch_len != 0) is handled exactly by
    #     dropping the missing columns: the PyTorch module zero-pads *after*
    #     the norm, and zero inputs contribute nothing to the matmul.
    for p in range(P):
        lo_l = p * patch_len
        width = min(patch_len, L - lo_l)
        acc = None
        for c in range(C):
            lhs = y_ref[:, c * L + lo_l: c * L + lo_l + width]      # (TB, w)
            rhs = w_ref[c * patch_len: c * patch_len + width, :]    # (w, D)
            part = jnp.dot(lhs, rhs, preferred_element_type=jnp.float32)
            acc = part if acc is None else acc + part
        o_ref[:, p * D:(p + 1) * D] = (acc + bias).astype(o_ref.dtype)


def _round_up(v, m):
    return -(-v // m) * m


def _tile_vmem_bytes(tb, N, PD, K, D):
    """Padding-aware VMEM footprint (bytes) of one grid step: (8,128) tile
    padding of every block, double-buffered pipeline copies of x/out and of the
    grid-constant parameters, the normalized-activation scratch, plus headroom
    for the live LN temporaries."""
    f32 = 4
    x_blk = _round_up(tb, 8) * _round_up(N, 128) * f32
    o_blk = _round_up(tb, 8) * _round_up(PD, 128) * f32
    params = (2 * 8 * _round_up(N, 128)                  # gamma, beta
              + _round_up(K, 8) * _round_up(D, 128)      # weight
              + 8 * _round_up(D, 128)) * f32             # bias
    y_scr = x_blk                                        # normalized scratch
    live = 2 * x_blk                                     # x, xc/y values
    return 2 * (x_blk + o_blk) + 2 * params + y_scr + live


def _chip_info():
    """(vmem_capacity_bytes, tensorcores_per_chip) — best effort; defaults are
    the most conservative generation (v7x: 64 MiB, treat as single core)."""
    vmem_bytes, num_cores = 64 << 20, 1
    try:
        info = pltpu.get_tpu_info()
        vmem_bytes = int(getattr(info, "vmem_capacity_bytes", vmem_bytes))
        num_cores = int(getattr(info, "num_cores",
                                getattr(info, "num_tensorcores", num_cores)))
    except Exception:
        pass
    return vmem_bytes, num_cores


def _choose_tb(B, N, PD, K, D, vmem_budget, two_tensorcores):
    """Largest batch tile TB (divisor of B, TB == B or TB % 8 == 0 so the
    (TB, .) blocks satisfy the (8,128) constraint) that fits the VMEM budget.
    On 2-TensorCore chips (v7x) prefer an even grid so the "parallel" batch
    axis can shard across cores; on 1-TC v5e/v6e keep the single biggest block.
    """
    cands = [tb for tb in range(1, B + 1)
             if B % tb == 0 and (tb == B or tb % 8 == 0)]
    fitting = [tb for tb in cands
               if _tile_vmem_bytes(tb, N, PD, K, D) <= vmem_budget]
    tb = max(fitting) if fitting else min(cands)
    if two_tensorcores and tb == B and B % 2 == 0:
        half = B // 2
        if half % 8 == 0 and _tile_vmem_bytes(half, N, PD, K, D) <= vmem_budget:
            tb = half
    return tb


def weather_embedding(x, gamma, beta, W, bias, patch_len, block_b=None):
    """x: (B, C, L) float32 -> (B, ceil(L / patch_len), d_model).

    Functional equivalent of WeatherEmbedding.forward: LayerNorm over [C, L],
    zero-padding of a short final patch, patching, Linear projection."""
    B, C, L = x.shape
    D = W.shape[0]
    K = patch_len * C
    P = -(-L // patch_len)            # ceil; short last patch handled in-kernel
    N = C * L
    PD = P * D

    # ---- layout plumbing: every activation-sized step is a contiguous (free)
    # reshape; only the tiny weight matrix is physically permuted offline so
    # the kernel can consume x in its native channel-major layout. ----------
    x2 = x.reshape(B, N)
    g2 = gamma.reshape(1, N)
    b2 = beta.reshape(1, N)
    Wp = jnp.transpose(W.reshape(D, patch_len, C), (2, 1, 0)).reshape(K, D)
    bias2 = bias.reshape(1, D)

    vmem_bytes, num_cores = _chip_info()
    if block_b is not None:
        if B % block_b != 0 or not (block_b == B or block_b % 8 == 0):
            raise ValueError(
                "block_b must divide the batch and be a multiple of 8 (or the "
                f"full batch) to satisfy the (8,128) tiling constraint; got "
                f"block_b={block_b}, batch={B}")
        TB = block_b
    else:
        TB = _choose_tb(B, N, PD, K, D,
                        vmem_budget=vmem_bytes // 2,
                        two_tensorcores=(num_cores == 2))
    grid_b = B // TB

    kernel = functools.partial(_weather_embed_kernel,
                               C=C, L=L, patch_len=patch_len, P=P, D=D)

    cost = pl.CostEstimate(
        flops=2 * B * P * K * D + 8 * B * N,
        transcendentals=B,
        bytes_accessed=4 * (B * N + B * PD + 2 * N + K * D + D))

    out_flat = pl.pallas_call(
        kernel,
        out_shape=jax.ShapeDtypeStruct((B, PD), x.dtype),
        grid_spec=pltpu.PrefetchScalarGridSpec(
            num_scalar_prefetch=0,
            grid=(grid_b,),
            # gamma/beta/W/bias are grid-constant and KB-scale; they are simply
            # counted double-buffered in the VMEM model rather than forcing
            # pipeline_mode=pl.Buffered(1) (negligible win at these sizes).
            in_specs=[
                pl.BlockSpec((TB, N), lambda i: (i, 0)),
                pl.BlockSpec((1, N), lambda i: (0, 0)),
                pl.BlockSpec((1, N), lambda i: (0, 0)),
                pl.BlockSpec((K, D), lambda i: (0, 0)),
                pl.BlockSpec((1, D), lambda i: (0, 0)),
            ],
            out_specs=pl.BlockSpec((TB, PD), lambda i: (i, 0)),
            scratch_shapes=[pltpu.VMEM((TB, N), jnp.float32)],
        ),
        compiler_params=pltpu.CompilerParams(
            dimension_semantics=("parallel",),
            vmem_limit_bytes=int(vmem_bytes * 0.7)),
        cost_estimate=cost,
    )(x2, g2, b2, Wp, bias2)

    return out_flat.reshape(B, P, D)


def ref_forward(x, gamma, beta, W, bias, patch_len):
    """Pure-JAX reference matching the PyTorch module semantics."""
    B, C, L = x.shape
    mean = jnp.mean(x, axis=(1, 2), keepdims=True)
    var = jnp.mean((x - mean) ** 2, axis=(1, 2), keepdims=True)
    y = (x - mean) / jnp.sqrt(var + EPS) * gamma + beta
    pad = (-L) % patch_len
    if pad:
        y = jnp.concatenate([y, jnp.zeros((B, C, pad), y.dtype)], axis=2)
    y = jnp.transpose(y, (0, 2, 1)).reshape(B, -1, patch_len * C)
    return y @ W.T + bias


def _make_inputs(key, B, C, seq_len, patch_len, d_model, x_offset=0.0, x_scale=1.0):
    kx, kg, kb, kw, kbi = jax.random.split(key, 5)
    x = x_offset + x_scale * jax.random.normal(kx, (B, C, seq_len), dtype=jnp.float32)
    gamma = 1.0 + 0.1 * jax.random.normal(kg, (C, seq_len), dtype=jnp.float32)
    beta = 0.1 * jax.random.normal(kb, (C, seq_len), dtype=jnp.float32)
    lim = 1.0 / float(np.sqrt(patch_len * C))
    W = jax.random.uniform(kw, (d_model, patch_len * C), jnp.float32, -lim, lim)
    bias = jax.random.uniform(kbi, (d_model,), jnp.float32, -lim, lim)
    return x, gamma, beta, W, bias


if __name__ == "__main__":
    key = jax.random.PRNGKey(0)
    k1, k2, k3 = jax.random.split(key, 3)

    # 1) Small shapes consistent with the module: B=2, C=4, seq_len=16,
    #    patch_len=4 -> patch_num=4, d_model=32.  Auto TB = B (grid of 1).
    patch_len, d_model, seq_len, C, B = 4, 32, 16, 4, 2
    x, gamma, beta, W, bias = _make_inputs(k1, B, C, seq_len, patch_len, d_model)
    out = jax.block_until_ready(weather_embedding(x, gamma, beta, W, bias, patch_len))
    ref = ref_forward(x, gamma, beta, W, bias, patch_len)
    assert out.shape == (B, seq_len // patch_len, d_model)
    np.testing.assert_allclose(np.asarray(out), np.asarray(ref), rtol=1e-5, atol=1e-5)

    # 2) Multi-step batched grid (B=16, TB=8 -> grid=2) exercising the
    #    "parallel" batch axis and the (8,128)-valid user-supplied block_b.
    patch_len, d_model, seq_len, C, B = 4, 32, 16, 4, 16
    x, gamma, beta, W, bias = _make_inputs(k2, B, C, seq_len, patch_len, d_model)
    out = jax.block_until_ready(
        weather_embedding(x, gamma, beta, W, bias, patch_len, block_b=8))
    ref = ref_forward(x, gamma, beta, W, bias, patch_len)
    assert out.shape == (B, seq_len // patch_len, d_model)
    np.testing.assert_allclose(np.asarray(out), np.asarray(ref), rtol=1e-5, atol=1e-5)

    # 3) seq_len % patch_len != 0 (zero-padded final patch) with
    #    physical-unit-style inputs (large mean) to exercise the two-pass
    #    LayerNorm statistics and the padding branch.
    patch_len, d_model, seq_len, C, B = 4, 32, 14, 4, 2
    x, gamma, beta, W, bias = _make_inputs(
        k3, B, C, seq_len, patch_len, d_model, x_offset=300.0, x_scale=5.0)
    out = jax.block_until_ready(weather_embedding(x, gamma, beta, W, bias, patch_len))
    ref = ref_forward(x, gamma, beta, W, bias, patch_len)
    assert out.shape == (B, -(-seq_len // patch_len), d_model)
    np.testing.assert_allclose(np.asarray(out), np.asarray(ref), rtol=1e-5, atol=1e-4)

    print("KERNEL_OK")
</pallas_src>

<mosaic_0001>
module attributes {stable_mosaic.version = 11 : i64} {
  func.func @_weather_embed_kernel(%arg0: i32, %arg1: memref<2x64xf32, #tpu.memory_space<vmem>>, %arg2: memref<1x64xf32, #tpu.memory_space<vmem>>, %arg3: memref<1x64xf32, #tpu.memory_space<vmem>>, %arg4: memref<16x32xf32, #tpu.memory_space<vmem>>, %arg5: memref<1x32xf32, #tpu.memory_space<vmem>>, %arg6: memref<2x128xf32, #tpu.memory_space<vmem>>, %arg7: memref<2x64xf32, #tpu.memory_space<vmem>>) attributes {dimension_semantics = [#tpu.dimension_semantics<parallel>], iteration_bounds = array<i64: 1>, scalar_prefetch = 0 : i64, scratch_operands = 1 : i64, tpu.core_type = #tpu.core_type<tc>, window_params = [{transform_indices = @transform_0, window_bounds = array<i64: 2, 64>}, {pipeline_mode = #tpu.pipeline_mode<synchronous>, transform_indices = @transform_1, window_bounds = array<i64: 1, 64>}, {pipeline_mode = #tpu.pipeline_mode<synchronous>, transform_indices = @transform_2, window_bounds = array<i64: 1, 64>}, {pipeline_mode = #tpu.pipeline_mode<synchronous>, transform_indices = @transform_3, window_bounds = array<i64: 16, 32>}, {pipeline_mode = #tpu.pipeline_mode<synchronous>, transform_indices = @transform_4, window_bounds = array<i64: 1, 32>}, {transform_indices = @transform_5, window_bounds = array<i64: 2, 128>}]} {
    %c0 = arith.constant 0 : index
    %c0_0 = arith.constant 0 : index
    %0 = vector.load %arg1[%c0, %c0_0] : memref<2x64xf32, #tpu.memory_space<vmem>>, vector<2x64xf32>
    %cst = arith.constant dense<0.000000e+00> : vector<2xf32>
    %1 = vector.multi_reduction <add>, %0, %cst [1] : vector<2x64xf32> to vector<2xf32>
    %2 = vector.shape_cast %1 : vector<2xf32> to vector<2x1xf32>
    %cst_1 = arith.constant 1.562500e-02 : f32
    %3 = vector.broadcast %cst_1 : f32 to vector<2x1xf32>
    %4 = arith.mulf %2, %3 : vector<2x1xf32>
    %5 = vector.broadcast %4 : vector<2x1xf32> to vector<2x64xf32>
    %6 = arith.subf %0, %5 : vector<2x64xf32>
    %7 = arith.mulf %6, %6 : vector<2x64xf32>
    %cst_2 = arith.constant dense<0.000000e+00> : vector<2xf32>
    %8 = vector.multi_reduction <add>, %7, %cst_2 [1] : vector<2x64xf32> to vector<2xf32>
    %9 = vector.shape_cast %8 : vector<2xf32> to vector<2x1xf32>
    %cst_3 = arith.constant 1.562500e-02 : f32
    %10 = vector.broadcast %cst_3 : f32 to vector<2x1xf32>
    %11 = arith.mulf %9, %10 : vector<2x1xf32>
    %cst_4 = arith.constant 9.99999974E-6 : f32
    %12 = vector.broadcast %cst_4 : f32 to vector<2x1xf32>
    %13 = arith.addf %11, %12 : vector<2x1xf32>
    %14 = math.rsqrt %13 : vector<2x1xf32>
    %15 = vector.broadcast %14 : vector<2x1xf32> to vector<2x64xf32>
    %16 = arith.mulf %6, %15 : vector<2x64xf32>
    %c0_5 = arith.constant 0 : index
    %c0_6 = arith.constant 0 : index
    %17 = vector.load %arg2[%c0_5, %c0_6] : memref<1x64xf32, #tpu.memory_space<vmem>>, vector<1x64xf32>
    %18 = vector.broadcast %17 : vector<1x64xf32> to vector<2x64xf32>
    %19 = arith.mulf %16, %18 : vector<2x64xf32>
    %c0_7 = arith.constant 0 : index
    %c0_8 = arith.constant 0 : index
    %20 = vector.load %arg3[%c0_7, %c0_8] : memref<1x64xf32, #tpu.memory_space<vmem>>, vector<1x64xf32>
    %21 = vector.broadcast %20 : vector<1x64xf32> to vector<2x64xf32>
    %22 = arith.addf %19, %21 : vector<2x64xf32>
    %c0_9 = arith.constant 0 : index
    %c0_10 = arith.constant 0 : index
    %23 = vector.load %arg7[%c0_9, %c0_10] : memref<2x64xf32, #tpu.memory_space<vmem>>, vector<2x64xf32>
    tpu.vector_store %arg7[%c0_9, %c0_10], %22 {strides = array<i32>} : memref<2x64xf32, #tpu.memory_space<vmem>>, vector<2x64xf32>,
    %c0_11 = arith.constant 0 : index
    %c0_12 = arith.constant 0 : index
    %24 = vector.load %arg5[%c0_11, %c0_12] : memref<1x32xf32, #tpu.memory_space<vmem>>, vector<1x32xf32>
    %c0_13 = arith.constant 0 : index
    %c0_14 = arith.constant 0 : index
    %25 = vector.load %arg7[%c0_13, %c0_14] : memref<2x64xf32, #tpu.memory_space<vmem>>, vector<2x4xf32>
    %c0_15 = arith.constant 0 : index
    %c0_16 = arith.constant 0 : index
    %26 = vector.load %arg4[%c0_15, %c0_16] : memref<16x32xf32, #tpu.memory_space<vmem>>, vector<4x32xf32>
    %cst_17 = arith.constant dense<0.000000e+00> : vector<2x32xf32>
    %27 = tpu.matmul %25, %26, %cst_17 {dimension_numbers = #tpu.dot_dimension_numbers<[1], [0], [0], [1], [0, 0, 1, 1], [], []>} : vector<2x4xf32>, vector<4x32xf32>, vector<2x32xf32> -> vector<2x32xf32>
    %c0_18 = arith.constant 0 : index
    %c16 = arith.constant 16 : index
    %28 = vector.load %arg7[%c0_18, %c16] : memref<2x64xf32, #tpu.memory_space<vmem>>, vector<2x4xf32>
    %c4 = arith.constant 4 : index
    %c0_19 = arith.constant 0 : index
    %29 = vector.load %arg4[%c4, %c0_19] : memref<16x32xf32, #tpu.memory_space<vmem>>, vector<4x32xf32>
    %cst_20 = arith.constant dense<0.000000e+00> : vector<2x32xf32>
    %30 = tpu.matmul %28, %29, %cst_20 {dimension_numbers = #tpu.dot_dimension_numbers<[1], [0], [0], [1], [0, 0, 1, 1], [], []>} : vector<2x4xf32>, vector<4x32xf32>, vector<2x32xf32> -> vector<2x32xf32>
    %31 = arith.addf %27, %30 : vector<2x32xf32>
    %c0_21 = arith.constant 0 : index
    %c32 = arith.constant 32 : index
    %32 = vector.load %arg7[%c0_21, %c32] : memref<2x64xf32, #tpu.memory_space<vmem>>, vector<2x4xf32>
    %c8 = arith.constant 8 : index
    %c0_22 = arith.constant 0 : index
    %33 = vector.load %arg4[%c8, %c0_22] : memref<16x32xf32, #tpu.memory_space<vmem>>, vector<4x32xf32>
    %cst_23 = arith.constant dense<0.000000e+00> : vector<2x32xf32>
    %34 = tpu.matmul %32, %33, %cst_23 {dimension_numbers = #tpu.dot_dimension_numbers<[1], [0], [0], [1], [0, 0, 1, 1], [], []>} : vector<2x4xf32>, vector<4x32xf32>, vector<2x32xf32> -> vector<2x32xf32>
    %35 = arith.addf %31, %34 : vector<2x32xf32>
    %c0_24 = arith.constant 0 : index
    %c48 = arith.constant 48 : index
    %36 = vector.load %arg7[%c0_24, %c48] : memref<2x64xf32, #tpu.memory_space<vmem>>, vector<2x4xf32>
    %c12 = arith.constant 12 : index
    %c0_25 = arith.constant 0 : index
    %37 = vector.load %arg4[%c12, %c0_25] : memref<16x32xf32, #tpu.memory_space<vmem>>, vector<4x32xf32>
    %cst_26 = arith.constant dense<0.000000e+00> : vector<2x32xf32>
    %38 = tpu.matmul %36, %37, %cst_26 {dimension_numbers = #tpu.dot_dimension_numbers<[1], [0], [0], [1], [0, 0, 1, 1], [], []>} : vector<2x4xf32>, vector<4x32xf32>, vector<2x32xf32> -> vector<2x32xf32>
    %39 = arith.addf %35, %38 : vector<2x32xf32>
    %40 = vector.broadcast %24 : vector<1x32xf32> to vector<2x32xf32>
    %41 = arith.addf %39, %40 : vector<2x32xf32>
    %c0_27 = arith.constant 0 : index
    %c0_28 = arith.constant 0 : index
    %42 = vector.load %arg6[%c0_27, %c0_28] : memref<2x128xf32, #tpu.memory_space<vmem>>, vector<2x32xf32>
    tpu.vector_store %arg6[%c0_27, %c0_28], %41 {strides = array<i32>} : memref<2x128xf32, #tpu.memory_space<vmem>>, vector<2x32xf32>,
    %c0_29 = arith.constant 0 : index
    %c4_30 = arith.constant 4 : index
    %43 = vector.load %arg7[%c0_29, %c4_30] : memref<2x64xf32, #tpu.memory_space<vmem>>, vector<2x4xf32>
    %c0_31 = arith.constant 0 : index
    %c0_32 = arith.constant 0 : index
    %44 = vector.load %arg4[%c0_31, %c0_32] : memref<16x32xf32, #tpu.memory_space<vmem>>, vector<4x32xf32>
    %cst_33 = arith.constant dense<0.000000e+00> : vector<2x32xf32>
    %45 = tpu.matmul %43, %44, %cst_33 {dimension_numbers = #tpu.dot_dimension_numbers<[1], [0], [0], [1], [0, 0, 1, 1], [], []>} : vector<2x4xf32>, vector<4x32xf32>, vector<2x32xf32> -> vector<2x32xf32>
    %c0_34 = arith.constant 0 : index
    %c20 = arith.constant 20 : index
    %46 = vector.load %arg7[%c0_34, %c20] : memref<2x64xf32, #tpu.memory_space<vmem>>, vector<2x4xf32>
    %c4_35 = arith.constant 4 : index
    %c0_36 = arith.constant 0 : index
    %47 = vector.load %arg4[%c4_35, %c0_36] : memref<16x32xf32, #tpu.memory_space<vmem>>, vector<4x32xf32>
    %cst_37 = arith.constant dense<0.000000e+00> : vector<2x32xf32>
    %48 = tpu.matmul %46, %47, %cst_37 {dimension_numbers = #tpu.dot_dimension_numbers<[1], [0], [0], [1], [0, 0, 1, 1], [], []>} : vector<2x4xf32>, vector<4x32xf32>, vector<2x32xf32> -> vector<2x32xf32>
    %49 = arith.addf %45, %48 : vector<2x32xf32>
    %c0_38 = arith.constant 0 : index
    %c36 = arith.constant 36 : index
    %50 = vector.load %arg7[%c0_38, %c36] : memref<2x64xf32, #tpu.memory_space<vmem>>, vector<2x4xf32>
    %c8_39 = arith.constant 8 : index
    %c0_40 = arith.constant 0 : index
    %51 = vector.load %arg4[%c8_39, %c0_40] : memref<16x32xf32, #tpu.memory_space<vmem>>, vector<4x32xf32>
    %cst_41 = arith.constant dense<0.000000e+00> : vector<2x32xf32>
    %52 = tpu.matmul %50, %51, %cst_41 {dimension_numbers = #tpu.dot_dimension_numbers<[1], [0], [0], [1], [0, 0, 1, 1], [], []>} : vector<2x4xf32>, vector<4x32xf32>, vector<2x32xf32> -> vector<2x32xf32>
    %53 = arith.addf %49, %52 : vector<2x32xf32>
    %c0_42 = arith.constant 0 : index
    %c52 = arith.constant 52 : index
    %54 = vector.load %arg7[%c0_42, %c52] : memref<2x64xf32, #tpu.memory_space<vmem>>, vector<2x4xf32>
    %c12_43 = arith.constant 12 : index
    %c0_44 = arith.constant 0 : index
    %55 = vector.load %arg4[%c12_43, %c0_44] : memref<16x32xf32, #tpu.memory_space<vmem>>, vector<4x32xf32>
    %cst_45 = arith.constant dense<0.000000e+00> : vector<2x32xf32>
    %56 = tpu.matmul %54, %55, %cst_45 {dimension_numbers = #tpu.dot_dimension_numbers<[1], [0], [0], [1], [0, 0, 1, 1], [], []>} : vector<2x4xf32>, vector<4x32xf32>, vector<2x32xf32> -> vector<2x32xf32>
    %57 = arith.addf %53, %56 : vector<2x32xf32>
    %58 = vector.broadcast %24 : vector<1x32xf32> to vector<2x32xf32>
    %59 = arith.addf %57, %58 : vector<2x32xf32>
    %c0_46 = arith.constant 0 : index
    %c32_47 = arith.constant 32 : index
    %60 = vector.load %arg6[%c0_46, %c32_47] : memref<2x128xf32, #tpu.memory_space<vmem>>, vector<2x32xf32>
    tpu.vector_store %arg6[%c0_46, %c32_47], %59 {strides = array<i32>} : memref<2x128xf32, #tpu.memory_space<vmem>>, vector<2x32xf32>,
    %c0_48 = arith.constant 0 : index
    %c8_49 = arith.constant 8 : index
    %61 = vector.load %arg7[%c0_48, %c8_49] : memref<2x64xf32, #tpu.memory_space<vmem>>, vector<2x4xf32>
    %c0_50 = arith.constant 0 : index
    %c0_51 = arith.constant 0 : index
    %62 = vector.load %arg4[%c0_50, %c0_51] : memref<16x32xf32, #tpu.memory_space<vmem>>, vector<4x32xf32>
    %cst_52 = arith.constant dense<0.000000e+00> : vector<2x32xf32>
    %63 = tpu.matmul %61, %62, %cst_52 {dimension_numbers = #tpu.dot_dimension_numbers<[1], [0], [0], [1], [0, 0, 1, 1], [], []>} : vector<2x4xf32>, vector<4x32xf32>, vector<2x32xf32> -> vector<2x32xf32>
    %c0_53 = arith.constant 0 : index
    %c24 = arith.constant 24 : index
    %64 = vector.load %arg7[%c0_53, %c24] : memref<2x64xf32, #tpu.memory_space<vmem>>, vector<2x4xf32>
    %c4_54 = arith.constant 4 : index
    %c0_55 = arith.constant 0 : index
    %65 = vector.load %arg4[%c4_54, %c0_55] : memref<16x32xf32, #tpu.memory_space<vmem>>, vector<4x32xf32>
    %cst_56 = arith.constant dense<0.000000e+00> : vector<2x32xf32>
    %66 = tpu.matmul %64, %65, %cst_56 {dimension_numbers = #tpu.dot_dimension_numbers<[1], [0], [0], [1], [0, 0, 1, 1], [], []>} : vector<2x4xf32>, vector<4x32xf32>, vector<2x32xf32> -> vector<2x32xf32>
    %67 = arith.addf %63, %66 : vector<2x32xf32>
    %c0_57 = arith.constant 0 : index
    %c40 = arith.constant 40 : index
    %68 = vector.load %arg7[%c0_57, %c40] : memref<2x64xf32, #tpu.memory_space<vmem>>, vector<2x4xf32>
    %c8_58 = arith.constant 8 : index
    %c0_59 = arith.constant 0 : index
    %69 = vector.load %arg4[%c8_58, %c0_59] : memref<16x32xf32, #tpu.memory_space<vmem>>, vector<4x32xf32>
    %cst_60 = arith.constant dense<0.000000e+00> : vector<2x32xf32>
    %70 = tpu.matmul %68, %69, %cst_60 {dimension_numbers = #tpu.dot_dimension_numbers<[1], [0], [0], [1], [0, 0, 1, 1], [], []>} : vector<2x4xf32>, vector<4x32xf32>, vector<2x32xf32> -> vector<2x32xf32>
    %71 = arith.addf %67, %70 : vector<2x32xf32>
    %c0_61 = arith.constant 0 : index
    %c56 = arith.constant 56 : index
    %72 = vector.load %arg7[%c0_61, %c56] : memref<2x64xf32, #tpu.memory_space<vmem>>, vector<2x4xf32>
    %c12_62 = arith.constant 12 : index
    %c0_63 = arith.constant 0 : index
    %73 = vector.load %arg4[%c12_62, %c0_63] : memref<16x32xf32, #tpu.memory_space<vmem>>, vector<4x32xf32>
    %cst_64 = arith.constant dense<0.000000e+00> : vector<2x32xf32>
    %74 = tpu.matmul %72, %73, %cst_64 {dimension_numbers = #tpu.dot_dimension_numbers<[1], [0], [0], [1], [0, 0, 1, 1], [], []>} : vector<2x4xf32>, vector<4x32xf32>, vector<2x32xf32> -> vector<2x32xf32>
    %75 = arith.addf %71, %74 : vector<2x32xf32>
    %76 = vector.broadcast %24 : vector<1x32xf32> to vector<2x32xf32>
    %77 = arith.addf %75, %76 : vector<2x32xf32>
    %c0_65 = arith.constant 0 : index
    %c64 = arith.constant 64 : index
    %78 = vector.load %arg6[%c0_65, %c64] : memref<2x128xf32, #tpu.memory_space<vmem>>, vector<2x32xf32>
    tpu.vector_store %arg6[%c0_65, %c64], %77 {strides = array<i32>} : memref<2x128xf32, #tpu.memory_space<vmem>>, vector<2x32xf32>,
    %c0_66 = arith.constant 0 : index
    %c12_67 = arith.constant 12 : index
    %79 = vector.load %arg7[%c0_66, %c12_67] : memref<2x64xf32, #tpu.memory_space<vmem>>, vector<2x4xf32>
    %c0_68 = arith.constant 0 : index
    %c0_69 = arith.constant 0 : index
    %80 = vector.load %arg4[%c0_68, %c0_69] : memref<16x32xf32, #tpu.memory_space<vmem>>, vector<4x32xf32>
    %cst_70 = arith.constant dense<0.000000e+00> : vector<2x32xf32>
    %81 = tpu.matmul %79, %80, %cst_70 {dimension_numbers = #tpu.dot_dimension_numbers<[1], [0], [0], [1], [0, 0, 1, 1], [], []>} : vector<2x4xf32>, vector<4x32xf32>, vector<2x32xf32> -> vector<2x32xf32>
    %c0_71 = arith.constant 0 : index
    %c28 = arith.constant 28 : index
    %82 = vector.load %arg7[%c0_71, %c28] : memref<2x64xf32, #tpu.memory_space<vmem>>, vector<2x4xf32>
    %c4_72 = arith.constant 4 : index
    %c0_73 = arith.constant 0 : index
    %83 = vector.load %arg4[%c4_72, %c0_73] : memref<16x32xf32, #tpu.memory_space<vmem>>, vector<4x32xf32>
    %cst_74 = arith.constant dense<0.000000e+00> : vector<2x32xf32>
    %84 = tpu.matmul %82, %83, %cst_74 {dimension_numbers = #tpu.dot_dimension_numbers<[1], [0], [0], [1], [0, 0, 1, 1], [], []>} : vector<2x4xf32>, vector<4x32xf32>, vector<2x32xf32> -> vector<2x32xf32>
    %85 = arith.addf %81, %84 : vector<2x32xf32>
    %c0_75 = arith.constant 0 : index
    %c44 = arith.constant 44 : index
    %86 = vector.load %arg7[%c0_75, %c44] : memref<2x64xf32, #tpu.memory_space<vmem>>, vector<2x4xf32>
    %c8_76 = arith.constant 8 : index
    %c0_77 = arith.constant 0 : index
    %87 = vector.load %arg4[%c8_76, %c0_77] : memref<16x32xf32, #tpu.memory_space<vmem>>, vector<4x32xf32>
    %cst_78 = arith.constant dense<0.000000e+00> : vector<2x32xf32>
    %88 = tpu.matmul %86, %87, %cst_78 {dimension_numbers = #tpu.dot_dimension_numbers<[1], [0], [0], [1], [0, 0, 1, 1], [], []>} : vector<2x4xf32>, vector<4x32xf32>, vector<2x32xf32> -> vector<2x32xf32>
    %89 = arith.addf %85, %88 : vector<2x32xf32>
    %c0_79 = arith.constant 0 : index
    %c60 = arith.constant 60 : index
    %90 = vector.load %arg7[%c0_79, %c60] : memref<2x64xf32, #tpu.memory_space<vmem>>, vector<2x4xf32>
    %c12_80 = arith.constant 12 : index
    %c0_81 = arith.constant 0 : index
    %91 = vector.load %arg4[%c12_80, %c0_81] : memref<16x32xf32, #tpu.memory_space<vmem>>, vector<4x32xf32>
    %cst_82 = arith.constant dense<0.000000e+00> : vector<2x32xf32>
    %92 = tpu.matmul %90, %91, %cst_82 {dimension_numbers = #tpu.dot_dimension_numbers<[1], [0], [0], [1], [0, 0, 1, 1], [], []>} : vector<2x4xf32>, vector<4x32xf32>, vector<2x32xf32> -> vector<2x32xf32>
    %93 = arith.addf %89, %92 : vector<2x32xf32>
    %94 = vector.broadcast %24 : vector<1x32xf32> to vector<2x32xf32>
    %95 = arith.addf %93, %94 : vector<2x32xf32>
    %c0_83 = arith.constant 0 : index
    %c96 = arith.constant 96 : index
    %96 = vector.load %arg6[%c0_83, %c96] : memref<2x128xf32, #tpu.memory_space<vmem>>, vector<2x32xf32>
    tpu.vector_store %arg6[%c0_83, %c96], %95 {strides = array<i32>} : memref<2x128xf32, #tpu.memory_space<vmem>>, vector<2x32xf32>,
    return
  }
  func.func @transform_0(%arg0: i32) -> (i32, i32) {
    %c0_i32 = arith.constant 0 : i32
    %c0_i32_0 = arith.constant 0 : i32
    return %arg0, %c0_i32 : i32, i32
  }
  func.func @transform_1(%arg0: i32) -> (i32, i32) {
    %c0_i32 = arith.constant 0 : i32
    %c0_i32_0 = arith.constant 0 : i32
    %c0_i32_1 = arith.constant 0 : i32
    return %c0_i32, %c0_i32_0 : i32, i32
  }
  func.func @transform_2(%arg0: i32) -> (i32, i32) {
    %c0_i32 = arith.constant 0 : i32
    %c0_i32_0 = arith.constant 0 : i32
    %c0_i32_1 = arith.constant 0 : i32
    return %c0_i32, %c0_i32_0 : i32, i32
  }
  func.func @transform_3(%arg0: i32) -> (i32, i32) {
    %c0_i32 = arith.constant 0 : i32
    %c0_i32_0 = arith.constant 0 : i32
    %c0_i32_1 = arith.constant 0 : i32
    return %c0_i32, %c0_i32_0 : i32, i32
  }
  func.func @transform_4(%arg0: i32) -> (i32, i32) {
    %c0_i32 = arith.constant 0 : i32
    %c0_i32_0 = arith.constant 0 : i32
    %c0_i32_1 = arith.constant 0 : i32
    return %c0_i32, %c0_i32_0 : i32, i32
  }
  func.func @transform_5(%arg0: i32) -> (i32, i32) {
    %c0_i32 = arith.constant 0 : i32
    %c0_i32_0 = arith.constant 0 : i32
    return %arg0, %c0_i32 : i32, i32
  }
}

</mosaic_0001>

<llo_original>
// kernel: tpu_custom_call.1
$region0: #{tpu_custom_call.1}
  #allocation0 [shape = 'u32[]', space=smem, size = 0x4, offset = 0x4, fixed_abs, tag = 'smem constant byte address 0x4 - core index']
  #allocation1 [shape = 'u32[72,128]{1,0:T(1,128)}', space=vmem, size = 0x9000, scoped, tag = 'internal scratch']
  #allocation2 [shape = 'f32[2,64]{1,0:T(2,128)}', space=vmem, size = 0x400, scoped, tag = 'scratch operand']
  %s0 = inlined_call_operand.hbm [shape: f32[2,64], index: 0, kind: input, shape index: {}]
  %s1 = inlined_call_operand.hbm [shape: f32[1,64], index: 1, kind: input, shape index: {}]
  %s2 = inlined_call_operand.vmem [shape: f32[1,64], index: 2, kind: input, shape index: {}]
  %s3 = inlined_call_operand.hbm [shape: f32[16,32], index: 3, kind: input, shape index: {}]
  %s4 = inlined_call_operand.vmem [shape: f32[1,32], index: 4, kind: input, shape index: {}]
  %s5 = inlined_call_operand.hbm [shape: f32[2,128], index: 5, kind: output, shape index: {}]
  %s6 = sld [smem:[#allocation0]]
  $region42: #{tpu_custom_call.1} parent=0
    _
  %s8 = ssub.s32 1, %s6
  %s9 = scalar_select 0, %s8, %s6
  $region1: #{tpu_custom_call.1} parent=0
    #allocation3 [shape = 'u8[1024]{0}', space=vmem, size = 0x400, scoped, tag = 'input window, operand 0, single buffered']
    #allocation4 [shape = 's32[1]{0}', space=sflag, size = 0x4, scoped, tag = 'scoped memory for tpu_custom_call.1']
    #allocation5 [shape = 's32[1]{0}', space=sflag, size = 0x4, scoped, tag = 'scoped memory for tpu_custom_call.1']
    #allocation6 [shape = 'u8[512]{0}', space=vmem, size = 0x400, scoped, tag = 'input window, operand 1, single buffered']
    #allocation7 [shape = 's32[1]{0}', space=sflag, size = 0x4, scoped, tag = 'scoped memory for tpu_custom_call.1']
    #allocation8 [shape = 'u8[8192]{0}', space=vmem, size = 0x2000, scoped, tag = 'input window, operand 3, single buffered']
    #allocation9 [shape = 'u8[1024]{0}', space=vmem, size = 0x400, scoped, tag = 'output window, operand 0, single buffered']
    %10 = vsyncpa [#allocation4], 0
    %11 = vsyncpa [#allocation7], 0
    %12 = vsyncpa [#allocation5], 0
    // Predicated region
    $region2: #{tpu_custom_call.1} parent=1 // pred_check
      _
    $region3: #{tpu_custom_call.1} parent=1 // pred_check_branch
      %14 = sbr.rel (0) target = $region5
    $region4: #{tpu_custom_call.1} parent=1 // pred_region
      %16 = vsyncadd [#allocation4], 0
      %s18 = sshll.u32 %s0, 4
      %s19 = int_to_ptr.hbm [resolvable:$true] %s18
      %s20 = sshll.u32 [#allocation3], 4
      %s21 = int_to_ptr.vmem [resolvable:$true] %s20
      %23 = dma.hbm_to_vmem [thread:$0]  %s19, 32, %s21, [#allocation4]
    $region5: #{tpu_custom_call.1} parent=1 // pred_fallthru
      _
    // Predicated region
    $region6: #{tpu_custom_call.1} parent=1 // pred_check
      _
    $region7: #{tpu_custom_call.1} parent=1 // pred_check_branch
      %25 = sbr.rel (0) target = $region9
    $region8: #{tpu_custom_call.1} parent=1 // pred_region
      %27 = vsyncadd [#allocation7], 0
      %s29 = sshll.u32 %s1, 4
      %s30 = int_to_ptr.hbm [resolvable:$true] %s29
      %s31 = sshll.u32 [#allocation6], 4
      %s32 = int_to_ptr.vmem [resolvable:$true] %s31
      %34 = dma.hbm_to_vmem [thread:$0]  %s30, 16, %s32, [#allocation7]
    $region9: #{tpu_custom_call.1} parent=1 // pred_fallthru
      _
    // Predicated region
    $region10: #{tpu_custom_call.1} parent=1 // pred_check
      _
    $region11: #{tpu_custom_call.1} parent=1 // pred_check_branch
      %36 = sbr.rel (0) target = $region13
    $region12: #{tpu_custom_call.1} parent=1 // pred_region
      _
    $region13: #{tpu_custom_call.1} parent=1 // pred_fallthru
      _
    // Predicated region
    $region14: #{tpu_custom_call.1} parent=1 // pred_check
      _
    $region15: #{tpu_custom_call.1} parent=1 // pred_check_branch
      %38 = sbr.rel (0) target = $region17
    $region16: #{tpu_custom_call.1} parent=1 // pred_region
      %40 = vsyncadd [#allocation7], 0
      %s41 = sshll.u32 %s3, 4
      %s42 = int_to_ptr.hbm [resolvable:$true] %s41
      %s43 = sshll.u32 [#allocation8], 4
      %s44 = int_to_ptr.vmem [resolvable:$true] %s43
      %49 = dma.hbm_to_vmem [thread:$0]  %s42, 256, %s44, [#allocation7], 128, 128, 8
    $region17: #{tpu_custom_call.1} parent=1 // pred_fallthru
      _
    // Predicated region
    $region18: #{tpu_custom_call.1} parent=1 // pred_check
      _
    $region19: #{tpu_custom_call.1} parent=1 // pred_check_branch
      %51 = sbr.rel (0) target = $region21
    $region20: #{tpu_custom_call.1} parent=1 // pred_region
      _
    $region21: #{tpu_custom_call.1} parent=1 // pred_fallthru
      _
    // Predicated region
    $region22: #{tpu_custom_call.1} parent=1 // pred_check
      _
    $region23: #{tpu_custom_call.1} parent=1 // pred_check_branch
      %53 = sbr.rel (0) target = $region25
    $region24: #{tpu_custom_call.1} parent=1 // pred_region
      %55 = dma.done [#allocation4], 32
    $region25: #{tpu_custom_call.1} parent=1 // pred_fallthru
      _
    // Predicated region
    $region26: #{tpu_custom_call.1} parent=1 // pred_check
      _
    $region27: #{tpu_custom_call.1} parent=1 // pred_check_branch
      %57 = sbr.rel (0) target = $region29
    $region28: #{tpu_custom_call.1} parent=1 // pred_region
      %59 = dma.done [#allocation7], 16
    $region29: #{tpu_custom_call.1} parent=1 // pred_fallthru
      _
    // Predicated region
    $region30: #{tpu_custom_call.1} parent=1 // pred_check
      _
    $region31: #{tpu_custom_call.1} parent=1 // pred_check_branch
      %61 = sbr.rel (0) target = $region33
    $region32: #{tpu_custom_call.1} parent=1 // pred_region
      %63 = dma.done [#allocation7], 256
    $region33: #{tpu_custom_call.1} parent=1 // pred_fallthru
      _
    %v64 = vld [vmem:[#allocation3] sm:$0x3]
    %vm65 = vcmask 517120
    %v66 = vsel %vm65, %v64, 0.0
    %67 = vadd.xlane.f32.xlu0 %v66
    %v68 = vpop.xlane.xlu0 %67
    %v69 = vmul.f32 %v68, 0.015625
    %v70 = vsub.f32 %v64, %v69
    %v71 = vmul.f32 %v70, %v70
    %v72 = vsel %vm65, %v71, 0.0
    %73 = vadd.xlane.f32.xlu0 %v72
    %v74 = vpop.xlane.xlu0 %73
    %v75 = vmul.f32 %v74, 0.015625
    %v76 = vadd.f32 %v75, 1e-05
    %v77 = vrsqrt.pop %v76
    %v78 = vmul.f32 %v77, %v76
    %v79 = vmul.f32 %v78, %v77
    %v80 = vmul.f32 0.5, %v79
    %v81 = vsub.f32 1.5, %v80
    %v82 = vmul.f32 %v77, %v81
    %vm83 = vweird.f32 %v76
    %vm84 = vweird.f32 %v77
    %vm85 = vmor %vm83, %vm84
    %v86 = vsel %vm85, %v77, %v82
    %v87 = vmul.f32 %v70, %v86
    %v88 = vld [vmem:[#allocation6] sm:$0x1]
    %v90 = vperm.slane %v88, 0
    %v92 = vmul.f32 %v87, %v90
    %v93 = vld [vmem:[%s2] sm:$0x1]
    %v95 = vperm.slane %v93, 0
    %v97 = vadd.f32 %v92, %v95
    %98 = vst.msk [vmem:[#allocation2] sm:$0x3] %vm65, %v97
    %v99 = vld [vmem:[%s4] sm:$0x1]
    %v100 = vld [vmem:[#allocation2] sm:$0x3]
    %v101 = vld [vmem:[#allocation8] sm:$0xf]
    %v102 = vld [vmem:[#allocation8 + $0x4] sm:$0xf]
    %104 = vrot.lane.b32.xlu0 %v100, 112
    %v105 = vpop.permute.xlu0 %104
    %vm106 = vcmask 31744
    %v107 = vsel %vm106, %v105, 0
    %vm109 = vcmask 1043456
    %v111 = vsel %vm109, %v102, 0
    %113 = vmatpush.msra.mxu0 0.0
    %114 = vmatpush.msra.mxu0 0.0
    %115 = vmatpush.msra.mxu0 0.0
    %116 = vmatpush.msra.mxu0 0.0
    %117 = vmatpush.msra.mxu0 0.0
    %118 = vmatpush.msra.mxu0 0.0
    %119 = vmatpush.msra.mxu0 0.0
    %120 = vmatpush.msra.mxu0 0.0
    %121 = vmatpush.msra.mxu0 0.0
    %122 = vmatpush.msra.mxu0 0.0
    %123 = vmatpush.msra.mxu0 0.0
    %124 = vmatpush.msra.mxu0 0.0
    %125 = vmatpush.msra.mxu0 0.0
    %126 = vmatpush.msra.mxu0 0.0
    %127 = vmatpush.msra.mxu0 0.0
    %128 = vmatpush.msra.mxu0 %v111
    %129 = vmatmul.f32.gmra.mxu0 %v107
    %v130 = vpop.f32.mrf.mxu0
    %v131 = vadd.f32 0.0, %v130
    %132 = vdwg.mxu0
    %v133 = vsel %vm106, %v100, 0
    %v136 = vsel %vm109, %v101, 0
    %138 = vmatpush.msra.mxu0 0.0
    %139 = vmatpush.msra.mxu0 0.0
    %140 = vmatpush.msra.mxu0 0.0
    %141 = vmatpush.msra.mxu0 0.0
    %142 = vmatpush.msra.mxu0 0.0
    %143 = vmatpush.msra.mxu0 0.0
    %144 = vmatpush.msra.mxu0 0.0
    %145 = vmatpush.msra.mxu0 0.0
    %146 = vmatpush.msra.mxu0 0.0
    %147 = vmatpush.msra.mxu0 0.0
    %148 = vmatpush.msra.mxu0 0.0
    %149 = vmatpush.msra.mxu0 0.0
    %150 = vmatpush.msra.mxu0 0.0
    %151 = vmatpush.msra.mxu0 0.0
    %152 = vmatpush.msra.mxu0 0.0
    %153 = vmatpush.msra.mxu0 %v136
    %154 = vmatmul.f32.gmra.mxu0 %v133
    %v155 = vpop.f32.mrf.mxu0
    %v156 = vadd.f32 %v131, %v155
    %157 = vdwg.mxu0
    %v158 = vld [vmem:[#allocation8 + $0x8] sm:$0xf]
    %159 = vrot.lane.b32.xlu0 %v100, 96
    %v160 = vpop.permute.xlu0 %159
    %v161 = vsel %vm106, %v160, 0
    %v164 = vsel %vm109, %v158, 0
    %166 = vmatpush.msra.mxu0 0.0
    %167 = vmatpush.msra.mxu0 0.0
    %168 = vmatpush.msra.mxu0 0.0
    %169 = vmatpush.msra.mxu0 0.0
    %170 = vmatpush.msra.mxu0 0.0
    %171 = vmatpush.msra.mxu0 0.0
    %172 = vmatpush.msra.mxu0 0.0
    %173 = vmatpush.msra.mxu0 0.0
    %174 = vmatpush.msra.mxu0 0.0
    %175 = vmatpush.msra.mxu0 0.0
    %176 = vmatpush.msra.mxu0 0.0
    %177 = vmatpush.msra.mxu0 0.0
    %178 = vmatpush.msra.mxu0 0.0
    %179 = vmatpush.msra.mxu0 0.0
    %180 = vmatpush.msra.mxu0 0.0
    %181 = vmatpush.msra.mxu0 %v164
    %182 = vmatmul.f32.gmra.mxu0 %v161
    %v183 = vpop.f32.mrf.mxu0
    %v184 = vadd.f32 0.0, %v183
    %185 = vdwg.mxu0
    %v186 = vadd.f32 %v156, %v184
    %v187 = vld [vmem:[#allocation8 + $0xc] sm:$0xf]
    %188 = vrot.lane.b32.xlu0 %v100, 80
    %v189 = vpop.permute.xlu0 %188
    %v190 = vsel %vm106, %v189, 0
    %v193 = vsel %vm109, %v187, 0
    %195 = vmatpush.msra.mxu0 0.0
    %196 = vmatpush.msra.mxu0 0.0
    %197 = vmatpush.msra.mxu0 0.0
    %198 = vmatpush.msra.mxu0 0.0
    %199 = vmatpush.msra.mxu0 0.0
    %200 = vmatpush.msra.mxu0 0.0
    %201 = vmatpush.msra.mxu0 0.0
    %202 = vmatpush.msra.mxu0 0.0
    %203 = vmatpush.msra.mxu0 0.0
    %204 = vmatpush.msra.mxu0 0.0
    %205 = vmatpush.msra.mxu0 0.0
    %206 = vmatpush.msra.mxu0 0.0
    %207 = vmatpush.msra.mxu0 0.0
    %208 = vmatpush.msra.mxu0 0.0
    %209 = vmatpush.msra.mxu0 0.0
    %210 = vmatpush.msra.mxu0 %v193
    %211 = vmatmul.f32.gmra.mxu0 %v190
    %v212 = vpop.f32.mrf.mxu0
    %v213 = vadd.f32 0.0, %v212
    %214 = vdwg.mxu0
    %v215 = vadd.f32 %v186, %v213
    %v217 = vperm.slane %v99, 0
    %v219 = vadd.f32 %v215, %v217
    %vm220 = vcmask 254976
    %221 = vst.msk [vmem:[#allocation9] sm:$0x3] %vm220, %v219
    %v222 = vld [vmem:[#allocation2] sm:$0x3]
    %v223 = vld [vmem:[#allocation8] sm:$0xf]
    %v224 = vld [vmem:[#allocation8 + $0x4] sm:$0xf]
    %226 = vrot.lane.b32.xlu0 %v222, 108
    %v227 = vpop.permute.xlu0 %226
    %v228 = vsel %vm106, %v227, 0
    %v231 = vsel %vm109, %v224, 0
    %233 = vmatpush.msra.mxu0 0.0
    %234 = vmatpush.msra.mxu0 0.0
    %235 = vmatpush.msra.mxu0 0.0
    %236 = vmatpush.msra.mxu0 0.0
    %237 = vmatpush.msra.mxu0 0.0
    %238 = vmatpush.msra.mxu0 0.0
    %239 = vmatpush.msra.mxu0 0.0
    %240 = vmatpush.msra.mxu0 0.0
    %241 = vmatpush.msra.mxu0 0.0
    %242 = vmatpush.msra.mxu0 0.0
    %243 = vmatpush.msra.mxu0 0.0
    %244 = vmatpush.msra.mxu0 0.0
    %245 = vmatpush.msra.mxu0 0.0
    %246 = vmatpush.msra.mxu0 0.0
    %247 = vmatpush.msra.mxu0 0.0
    %248 = vmatpush.msra.mxu0 %v231
    %249 = vmatmul.f32.gmra.mxu0 %v228
    %v250 = vpop.f32.mrf.mxu0
    %v251 = vadd.f32 0.0, %v250
    %252 = vdwg.mxu0
    %253 = vrot.lane.b32.xlu0 %v222, 124
    %v254 = vpop.permute.xlu0 %253
    %v255 = vsel %vm106, %v254, 0
    %v258 = vsel %vm109, %v223, 0
    %260 = vmatpush.msra.mxu0 0.0
    %261 = vmatpush.msra.mxu0 0.0
    %262 = vmatpush.msra.mxu0 0.0
    %263 = vmatpush.msra.mxu0 0.0
    %264 = vmatpush.msra.mxu0 0.0
    %265 = vmatpush.msra.mxu0 0.0
    %266 = vmatpush.msra.mxu0 0.0
    %267 = vmatpush.msra.mxu0 0.0
    %268 = vmatpush.msra.mxu0 0.0
    %269 = vmatpush.msra.mxu0 0.0
    %270 = vmatpush.msra.mxu0 0.0
    %271 = vmatpush.msra.mxu0 0.0
    %272 = vmatpush.msra.mxu0 0.0
    %273 = vmatpush.msra.mxu0 0.0
    %274 = vmatpush.msra.mxu0 0.0
    %275 = vmatpush.msra.mxu0 %v258
    %276 = vmatmul.f32.gmra.mxu0 %v255
    %v277 = vpop.f32.mrf.mxu0
    %v278 = vadd.f32 %v251, %v277
    %279 = vdwg.mxu0
    %v280 = vld [vmem:[#allocation8 + $0x8] sm:$0xf]
    %281 = vrot.lane.b32.xlu0 %v222, 92
    %v282 = vpop.permute.xlu0 %281
    %v283 = vsel %vm106, %v282, 0
    %v286 = vsel %vm109, %v280, 0
    %288 = vmatpush.msra.mxu0 0.0
    %289 = vmatpush.msra.mxu0 0.0
    %290 = vmatpush.msra.mxu0 0.0
    %291 = vmatpush.msra.mxu0 0.0
    %292 = vmatpush.msra.mxu0 0.0
    %293 = vmatpush.msra.mxu0 0.0
    %294 = vmatpush.msra.mxu0 0.0
    %295 = vmatpush.msra.mxu0 0.0
    %296 = vmatpush.msra.mxu0 0.0
    %297 = vmatpush.msra.mxu0 0.0
    %298 = vmatpush.msra.mxu0 0.0
    %299 = vmatpush.msra.mxu0 0.0
    %300 = vmatpush.msra.mxu0 0.0
    %301 = vmatpush.msra.mxu0 0.0
    %302 = vmatpush.msra.mxu0 0.0
    %303 = vmatpush.msra.mxu0 %v286
    %304 = vmatmul.f32.gmra.mxu0 %v283
    %v305 = vpop.f32.mrf.mxu0
    %v306 = vadd.f32 0.0, %v305
    %307 = vdwg.mxu0
    %v308 = vadd.f32 %v278, %v306
    %v309 = vld [vmem:[#allocation8 + $0xc] sm:$0xf]
    %310 = vrot.lane.b32.xlu0 %v222, 76
    %v311 = vpop.permute.xlu0 %310
    %v312 = vsel %vm106, %v311, 0
    %v315 = vsel %vm109, %v309, 0
    %317 = vmatpush.msra.mxu0 0.0
    %318 = vmatpush.msra.mxu0 0.0
    %319 = vmatpush.msra.mxu0 0.0
    %320 = vmatpush.msra.mxu0 0.0
    %321 = vmatpush.msra.mxu0 0.0
    %322 = vmatpush.msra.mxu0 0.0
    %323 = vmatpush.msra.mxu0 0.0
    %324 = vmatpush.msra.mxu0 0.0
    %325 = vmatpush.msra.mxu0 0.0
    %326 = vmatpush.msra.mxu0 0.0
    %327 = vmatpush.msra.mxu0 0.0
    %328 = vmatpush.msra.mxu0 0.0
    %329 = vmatpush.msra.mxu0 0.0
    %330 = vmatpush.msra.mxu0 0.0
    %331 = vmatpush.msra.mxu0 0.0
    %332 = vmatpush.msra.mxu0 %v315
    %333 = vmatmul.f32.gmra.mxu0 %v312
    %v334 = vpop.f32.mrf.mxu0
    %v335 = vadd.f32 0.0, %v334
    %336 = vdwg.mxu0
    %v337 = vadd.f32 %v308, %v335
    %v338 = vadd.f32 %v337, %v217
    %340 = vrot.lane.b32.xlu0 %v338, 32
    %v341 = vpop.permute.xlu0 %340
    %vm343 = vcmask 517376
    %344 = vst.msk [vmem:[#allocation9] sm:$0x3] %vm343, %v341
    %v345 = vld [vmem:[#allocation2] sm:$0x3]
    %v346 = vld [vmem:[#allocation8] sm:$0xf]
    %v347 = vld [vmem:[#allocation8 + $0x4] sm:$0xf]
    %349 = vrot.lane.b32.xlu0 %v345, 104
    %v350 = vpop.permute.xlu0 %349
    %v351 = vsel %vm106, %v350, 0
    %v354 = vsel %vm109, %v347, 0
    %356 = vmatpush.msra.mxu0 0.0
    %357 = vmatpush.msra.mxu0 0.0
    %358 = vmatpush.msra.mxu0 0.0
    %359 = vmatpush.msra.mxu0 0.0
    %360 = vmatpush.msra.mxu0 0.0
    %361 = vmatpush.msra.mxu0 0.0
    %362 = vmatpush.msra.mxu0 0.0
    %363 = vmatpush.msra.mxu0 0.0
    %364 = vmatpush.msra.mxu0 0.0
    %365 = vmatpush.msra.mxu0 0.0
    %366 = vmatpush.msra.mxu0 0.0
    %367 = vmatpush.msra.mxu0 0.0
    %368 = vmatpush.msra.mxu0 0.0
    %369 = vmatpush.msra.mxu0 0.0
    %370 = vmatpush.msra.mxu0 0.0
    %371 = vmatpush.msra.mxu0 %v354
    %372 = vmatmul.f32.gmra.mxu0 %v351
    %v373 = vpop.f32.mrf.mxu0
    %v374 = vadd.f32 0.0, %v373
    %375 = vdwg.mxu0
    %376 = vrot.lane.b32.xlu0 %v345, 120
    %v377 = vpop.permute.xlu0 %376
    %v378 = vsel %vm106, %v377, 0
    %v381 = vsel %vm109, %v346, 0
    %383 = vmatpush.msra.mxu0 0.0
    %384 = vmatpush.msra.mxu0 0.0
    %385 = vmatpush.msra.mxu0 0.0
    %386 = vmatpush.msra.mxu0 0.0
    %387 = vmatpush.msra.mxu0 0.0
    %388 = vmatpush.msra.mxu0 0.0
    %389 = vmatpush.msra.mxu0 0.0
    %390 = vmatpush.msra.mxu0 0.0
    %391 = vmatpush.msra.mxu0 0.0
    %392 = vmatpush.msra.mxu0 0.0
    %393 = vmatpush.msra.mxu0 0.0
    %394 = vmatpush.msra.mxu0 0.0
    %395 = vmatpush.msra.mxu0 0.0
    %396 = vmatpush.msra.mxu0 0.0
    %397 = vmatpush.msra.mxu0 0.0
    %398 = vmatpush.msra.mxu0 %v381
    %399 = vmatmul.f32.gmra.mxu0 %v378
    %v400 = vpop.f32.mrf.mxu0
    %v401 = vadd.f32 %v374, %v400
    %402 = vdwg.mxu0
    %v403 = vld [vmem:[#allocation8 + $0x8] sm:$0xf]
    %404 = vrot.lane.b32.xlu0 %v345, 88
    %v405 = vpop.permute.xlu0 %404
    %v406 = vsel %vm106, %v405, 0
    %v409 = vsel %vm109, %v403, 0
    %411 = vmatpush.msra.mxu0 0.0
    %412 = vmatpush.msra.mxu0 0.0
    %413 = vmatpush.msra.mxu0 0.0
    %414 = vmatpush.msra.mxu0 0.0
    %415 = vmatpush.msra.mxu0 0.0
    %416 = vmatpush.msra.mxu0 0.0
    %417 = vmatpush.msra.mxu0 0.0
    %418 = vmatpush.msra.mxu0 0.0
    %419 = vmatpush.msra.mxu0 0.0
    %420 = vmatpush.msra.mxu0 0.0
    %421 = vmatpush.msra.mxu0 0.0
    %422 = vmatpush.msra.mxu0 0.0
    %423 = vmatpush.msra.mxu0 0.0
    %424 = vmatpush.msra.mxu0 0.0
    %425 = vmatpush.msra.mxu0 0.0
    %426 = vmatpush.msra.mxu0 %v409
    %427 = vmatmul.f32.gmra.mxu0 %v406
    %v428 = vpop.f32.mrf.mxu0
    %v429 = vadd.f32 0.0, %v428
    %430 = vdwg.mxu0
    %v431 = vadd.f32 %v401, %v429
    %v432 = vld [vmem:[#allocation8 + $0xc] sm:$0xf]
    %433 = vrot.lane.b32.xlu0 %v345, 72
    %v434 = vpop.permute.xlu0 %433
    %v435 = vsel %vm106, %v434, 0
    %v438 = vsel %vm109, %v432, 0
    %440 = vmatpush.msra.mxu0 0.0
    %441 = vmatpush.msra.mxu0 0.0
    %442 = vmatpush.msra.mxu0 0.0
    %443 = vmatpush.msra.mxu0 0.0
    %444 = vmatpush.msra.mxu0 0.0
    %445 = vmatpush.msra.mxu0 0.0
    %446 = vmatpush.msra.mxu0 0.0
    %447 = vmatpush.msra.mxu0 0.0
    %448 = vmatpush.msra.mxu0 0.0
    %449 = vmatpush.msra.mxu0 0.0
    %450 = vmatpush.msra.mxu0 0.0
    %451 = vmatpush.msra.mxu0 0.0
    %452 = vmatpush.msra.mxu0 0.0
    %453 = vmatpush.msra.mxu0 0.0
    %454 = vmatpush.msra.mxu0 0.0
    %455 = vmatpush.msra.mxu0 %v438
    %456 = vmatmul.f32.gmra.mxu0 %v435
    %v457 = vpop.f32.mrf.mxu0
    %v458 = vadd.f32 0.0, %v457
    %459 = vdwg.mxu0
    %v460 = vadd.f32 %v431, %v458
    %v461 = vadd.f32 %v460, %v217
    %463 = vrot.lane.b32.xlu0 %v461, 64
    %v464 = vpop.permute.xlu0 %463
    %vm466 = vcmask 779776
    %467 = vst.msk [vmem:[#allocation9] sm:$0x3] %vm466, %v464
    %v468 = vld [vmem:[#allocation2] sm:$0x3]
    %v469 = vld [vmem:[#allocation8] sm:$0xf]
    %v470 = vld [vmem:[#allocation8 + $0x4] sm:$0xf]
    %472 = vrot.lane.b32.xlu0 %v468, 100
    %v473 = vpop.permute.xlu0 %472
    %v474 = vsel %vm106, %v473, 0
    %v477 = vsel %vm109, %v470, 0
    %479 = vmatpush.msra.mxu0 0.0
    %480 = vmatpush.msra.mxu0 0.0
    %481 = vmatpush.msra.mxu0 0.0
    %482 = vmatpush.msra.mxu0 0.0
    %483 = vmatpush.msra.mxu0 0.0
    %484 = vmatpush.msra.mxu0 0.0
    %485 = vmatpush.msra.mxu0 0.0
    %486 = vmatpush.msra.mxu0 0.0
    %487 = vmatpush.msra.mxu0 0.0
    %488 = vmatpush.msra.mxu0 0.0
    %489 = vmatpush.msra.mxu0 0.0
    %490 = vmatpush.msra.mxu0 0.0
    %491 = vmatpush.msra.mxu0 0.0
    %492 = vmatpush.msra.mxu0 0.0
    %493 = vmatpush.msra.mxu0 0.0
    %494 = vmatpush.msra.mxu0 %v477
    %495 = vmatmul.f32.gmra.mxu0 %v474
    %v496 = vpop.f32.mrf.mxu0
    %v497 = vadd.f32 0.0, %v496
    %498 = vdwg.mxu0
    %499 = vrot.lane.b32.xlu0 %v468, 116
    %v500 = vpop.permute.xlu0 %499
    %v501 = vsel %vm106, %v500, 0
    %v504 = vsel %vm109, %v469, 0
    %506 = vmatpush.msra.mxu0 0.0
    %507 = vmatpush.msra.mxu0 0.0
    %508 = vmatpush.msra.mxu0 0.0
    %509 = vmatpush.msra.mxu0 0.0
    %510 = vmatpush.msra.mxu0 0.0
    %511 = vmatpush.msra.mxu0 0.0
    %512 = vmatpush.msra.mxu0 0.0
    %513 = vmatpush.msra.mxu0 0.0
    %514 = vmatpush.msra.mxu0 0.0
    %515 = vmatpush.msra.mxu0 0.0
    %516 = vmatpush.msra.mxu0 0.0
    %517 = vmatpush.msra.mxu0 0.0
    %518 = vmatpush.msra.mxu0 0.0
    %519 = vmatpush.msra.mxu0 0.0
    %520 = vmatpush.msra.mxu0 0.0
    %521 = vmatpush.msra.mxu0 %v504
    %522 = vmatmul.f32.gmra.mxu0 %v501
    %v523 = vpop.f32.mrf.mxu0
    %v524 = vadd.f32 %v497, %v523
    %525 = vdwg.mxu0
    %v526 = vld [vmem:[#allocation8 + $0x8] sm:$0xf]
    %527 = vrot.lane.b32.xlu0 %v468, 84
    %v528 = vpop.permute.xlu0 %527
    %v529 = vsel %vm106, %v528, 0
    %v532 = vsel %vm109, %v526, 0
    %534 = vmatpush.msra.mxu0 0.0
    %535 = vmatpush.msra.mxu0 0.0
    %536 = vmatpush.msra.mxu0 0.0
    %537 = vmatpush.msra.mxu0 0.0
    %538 = vmatpush.msra.mxu0 0.0
    %539 = vmatpush.msra.mxu0 0.0
    %540 = vmatpush.msra.mxu0 0.0
    %541 = vmatpush.msra.mxu0 0.0
    %542 = vmatpush.msra.mxu0 0.0
    %543 = vmatpush.msra.mxu0 0.0
    %544 = vmatpush.msra.mxu0 0.0
    %545 = vmatpush.msra.mxu0 0.0
    %546 = vmatpush.msra.mxu0 0.0
    %547 = vmatpush.msra.mxu0 0.0
    %548 = vmatpush.msra.mxu0 0.0
    %549 = vmatpush.msra.mxu0 %v532
    %550 = vmatmul.f32.gmra.mxu0 %v529
    %v551 = vpop.f32.mrf.mxu0
    %v552 = vadd.f32 0.0, %v551
    %553 = vdwg.mxu0
    %v554 = vadd.f32 %v524, %v552
    %v555 = vld [vmem:[#allocation8 + $0xc] sm:$0xf]
    %556 = vrot.lane.b32.xlu0 %v468, 68
    %v557 = vpop.permute.xlu0 %556
    %v558 = vsel %vm106, %v557, 0
    %v561 = vsel %vm109, %v555, 0
    %563 = vmatpush.msra.mxu0 0.0
    %564 = vmatpush.msra.mxu0 0.0
    %565 = vmatpush.msra.mxu0 0.0
    %566 = vmatpush.msra.mxu0 0.0
    %567 = vmatpush.msra.mxu0 0.0
    %568 = vmatpush.msra.mxu0 0.0
    %569 = vmatpush.msra.mxu0 0.0
    %570 = vmatpush.msra.mxu0 0.0
    %571 = vmatpush.msra.mxu0 0.0
    %572 = vmatpush.msra.mxu0 0.0
    %573 = vmatpush.msra.mxu0 0.0
    %574 = vmatpush.msra.mxu0 0.0
    %575 = vmatpush.msra.mxu0 0.0
    %576 = vmatpush.msra.mxu0 0.0
    %577 = vmatpush.msra.mxu0 0.0
    %578 = vmatpush.msra.mxu0 %v561
    %579 = vmatmul.f32.gmra.mxu0 %v558
    %v580 = vpop.f32.mrf.mxu0
    %v581 = vadd.f32 0.0, %v580
    %582 = vdwg.mxu0
    %v583 = vadd.f32 %v554, %v581
    %v584 = vadd.f32 %v583, %v217
    %586 = vrot.lane.b32.xlu0 %v584, 96
    %v587 = vpop.permute.xlu0 %586
    %vm589 = vcmask 1042176
    %590 = vst.msk [vmem:[#allocation9] sm:$0x3] %vm589, %v587
    // Predicated region
    $region34: #{tpu_custom_call.1} parent=1 // pred_check
      _
    $region35: #{tpu_custom_call.1} parent=1 // pred_check_branch
      %592 = sbr.rel (0) target = $region37
    $region36: #{tpu_custom_call.1} parent=1 // pred_region
      %594 = vsyncadd [#allocation5], 0
      %s596 = sshll.u32 [#allocation9], 4
      %s597 = int_to_ptr.vmem [resolvable:$true] %s596
      %s598 = sshll.u32 %s5, 4
      %s599 = int_to_ptr.hbm [resolvable:$true] %s598
      %601 = dma.vmem_to_hbm [thread:$0]  %s597, 32, %s599, [#allocation5]
    $region37: #{tpu_custom_call.1} parent=1 // pred_fallthru
      _
    // Predicated region
    $region38: #{tpu_custom_call.1} parent=1 // pred_check
      _
    $region39: #{tpu_custom_call.1} parent=1 // pred_check_branch
      %603 = sbr.rel (0) target = $region41
    $region40: #{tpu_custom_call.1} parent=1 // pred_region
      %605 = dma.done [#allocation5], 32
    $region41: #{tpu_custom_call.1} parent=1 // pred_fallthru
      _
    %606 = vsyncpa [#allocation4], 1
    %607 = vsyncpa [#allocation7], 1
    %608 = vsyncpa [#allocation5], 1

</llo_original>
